<compile_context>
chip_gen: v5e
topology: v5e:2x2
jax: 0.10.0
libtpu: 0.0.40
codegen_flags: <defaults>
</compile_context>

<pallas_src>
import jax
import jax.numpy as jnp
from jax.experimental import pallas as pl
from jax.experimental.pallas import tpu as pltpu


def rul_estimator_kernel(x_ref, w_enc_ref, w_reg_ref, o_ref):
    """One batch tile: encode on the MXU, regress on VPU/XLU."""
    # stand-in encoder:  z = tanh(x_tile @ W_enc)          [TB, dz]
    z = jnp.tanh(
        jnp.dot(x_ref[...], w_enc_ref[...], preferred_element_type=jnp.float32)
    )
    # Regressor: Linear(dz, 1, bias=False) as VPU multiply + cross-lane reduce.
    o_ref[...] = jnp.sum(z * w_reg_ref[...], axis=-1, keepdims=True)


def _round_up(v, m):
    return ((v + m - 1) // m) * m


def _default_batch_tile(din, dz, vmem_budget_bytes=24 * 1024 * 1024):
    """Pick TB from the lane-padded VMEM footprint, not raw HBM bytes."""
    lane = 128
    din_p = _round_up(max(din, 1), lane)
    dz_p = _round_up(max(dz, 1), lane)
    # per batch-row f32 bytes in VMEM:
    #   x (double-buffered, lanes padded) + out (double-buffered, (TB,1) pads
    #   to 128 lanes) + ~2 f32 intermediates of width max(dz,128)
    per_row = 4 * (2 * din_p + 2 * lane + 2 * dz_p)
    tb = max(128, (vmem_budget_bytes // per_row) // 128 * 128)
    return int(min(tb, 32768))


def rul_estimator_forward(x, w_enc, w_reg, *, batch_tile=None):
    """x: [N, Din] f32, w_enc: [Din, dz] f32, w_reg: [dz, 1] f32 -> [N, 1] f32."""
    n, din = x.shape
    dz = w_enc.shape[1]
    assert w_reg.shape == (dz, 1)

    # Regressor weight as a broadcastable row (free metadata reshape, 4*dz B).
    w_reg_row = w_reg.reshape(1, dz)

    if batch_tile is None:
        tb = _default_batch_tile(din, dz)
        # Give the pipeline (and v7x's second TensorCore) at least 2 grid steps
        # once the batch is non-trivial.
        if n > 256:
            tb = min(tb, max(128, _round_up(pl.cdiv(n, 2), 128)))
    else:
        tb = int(batch_tile)

    if n <= tb:
        # Single block covers the whole batch (block == full array dims, so the
        # (8,128) divisibility rule is satisfied for any n/din).
        block_rows = n
        grid = (1,)
    else:
        # Tiled path: tb must be 128-aligned; the last block may be ragged
        # (no jnp.pad — OOB rows are undefined but their stores are dropped).
        assert tb % 128 == 0, "batch_tile must be a multiple of 128 when n > batch_tile"
        block_rows = tb
        grid = (pl.cdiv(n, tb),)

    cost = pl.CostEstimate(
        flops=2 * n * din * dz + 2 * n * dz,
        transcendentals=n * dz,
        bytes_accessed=4 * (n * din + din * dz + dz + n),
    )

    out = pl.pallas_call(
        rul_estimator_kernel,
        out_shape=jax.ShapeDtypeStruct((n, 1), jnp.float32),
        grid_spec=pltpu.PrefetchScalarGridSpec(
            num_scalar_prefetch=0,
            grid=grid,
            in_specs=[
                # batch-tiled input in its natural [N, Din] layout (no copies)
                pl.BlockSpec((block_rows, din), lambda i: (i, 0)),
                # weights: full blocks, resident across the grid
                pl.BlockSpec((din, dz), lambda i: (0, 0)),
                pl.BlockSpec((1, dz), lambda i: (0, 0)),
            ],
            out_specs=pl.BlockSpec((block_rows, 1), lambda i: (i, 0)),
        ),
        compiler_params=pltpu.CompilerParams(
            # only matters on v7x (2 TCs); harmless elsewhere
            dimension_semantics=("parallel",),
            # safe on v5e/v6e (128 MiB) and v7x (64 MiB physical / 32 scoped);
            # tile sizing above keeps the working set under ~24 MiB.
            vmem_limit_bytes=32 * 1024 * 1024,
        ),
        cost_estimate=cost,
    )(x, w_enc, w_reg_row)

    return out


def reference_forward(x, w_enc, w_reg):
    z = jnp.tanh(x @ w_enc)
    return z @ w_reg


if __name__ == "__main__":
    key = jax.random.PRNGKey(0)
    k_x, k_enc, k_reg = jax.random.split(key, 3)

    N, Din, dz = 16, 32, 16  # small shapes consistent with the module

    x = jax.random.normal(k_x, (N, Din), dtype=jnp.float32)
    # deterministic "pretrained" parameters (synthetic, not a checkpoint load)
    w_enc = jax.random.normal(k_enc, (Din, dz), dtype=jnp.float32) / jnp.sqrt(Din)
    # Regressor.linear: src_utils.Linear(dz, 1, bias=False) -> weight [1, dz],
    # stored transposed as [dz, 1] so rul = z @ w_reg.
    w_reg = jax.random.normal(k_reg, (dz, 1), dtype=jnp.float32) / jnp.sqrt(dz)

    # Small case: single block, grid=(1,)
    rul = rul_estimator_forward(x, w_enc, w_reg)
    rul = jax.block_until_ready(rul)
    ref = reference_forward(x, w_enc, w_reg)
    assert rul.shape == (N, 1)
    assert jnp.allclose(rul, ref, atol=1e-5, rtol=1e-5), "mismatch vs reference"

    # Ragged / tiled case with an explicit tile: exercises the no-pad ragged
    # last block (grid=3, last block 44 valid rows).
    N2 = 300
    x2 = jax.random.normal(jax.random.PRNGKey(1), (N2, Din), dtype=jnp.float32)
    rul2 = rul_estimator_forward(x2, w_enc, w_reg, batch_tile=128)
    rul2 = jax.block_until_ready(rul2)
    ref2 = reference_forward(x2, w_enc, w_reg)
    assert rul2.shape == (N2, 1)
    assert jnp.allclose(rul2, ref2, atol=1e-5, rtol=1e-5), "mismatch vs reference (tiled)"

    # Default adaptive tile with n > 256: tile is clipped so the grid has 2
    # steps (last one ragged), no padding, no wrapper copies.
    N3 = 1000
    x3 = jax.random.normal(jax.random.PRNGKey(2), (N3, Din), dtype=jnp.float32)
    rul3 = rul_estimator_forward(x3, w_enc, w_reg)
    rul3 = jax.block_until_ready(rul3)
    ref3 = reference_forward(x3, w_enc, w_reg)
    assert rul3.shape == (N3, 1)
    assert jnp.allclose(rul3, ref3, atol=1e-5, rtol=1e-5), "mismatch vs reference (adaptive)"

    print("KERNEL_OK")
</pallas_src>

<mosaic_0001>
module attributes {stable_mosaic.version = 11 : i64} {
  func.func @rul_estimator_kernel(%arg0: i32, %arg1: memref<16x32xf32, #tpu.memory_space<vmem>>, %arg2: memref<32x16xf32, #tpu.memory_space<vmem>>, %arg3: memref<1x16xf32, #tpu.memory_space<vmem>>, %arg4: memref<16x1xf32, #tpu.memory_space<vmem>>) attributes {dimension_semantics = [#tpu.dimension_semantics<parallel>], iteration_bounds = array<i64: 1>, scalar_prefetch = 0 : i64, scratch_operands = 0 : i64, tpu.core_type = #tpu.core_type<tc>, window_params = [{transform_indices = @transform_0, window_bounds = array<i64: 16, 32>}, {pipeline_mode = #tpu.pipeline_mode<synchronous>, transform_indices = @transform_1, window_bounds = array<i64: 32, 16>}, {pipeline_mode = #tpu.pipeline_mode<synchronous>, transform_indices = @transform_2, window_bounds = array<i64: 1, 16>}, {transform_indices = @transform_3, window_bounds = array<i64: 16, 1>}]} {
    %c0 = arith.constant 0 : index
    %c0_0 = arith.constant 0 : index
    %0 = vector.load %arg1[%c0, %c0_0] : memref<16x32xf32, #tpu.memory_space<vmem>>, vector<16x32xf32>
    %c0_1 = arith.constant 0 : index
    %c0_2 = arith.constant 0 : index
    %1 = vector.load %arg2[%c0_1, %c0_2] : memref<32x16xf32, #tpu.memory_space<vmem>>, vector<32x16xf32>
    %cst = arith.constant dense<0.000000e+00> : vector<16x16xf32>
    %2 = tpu.matmul %0, %1, %cst {dimension_numbers = #tpu.dot_dimension_numbers<[1], [0], [0], [1], [0, 0, 1, 1], [], []>} : vector<16x32xf32>, vector<32x16xf32>, vector<16x16xf32> -> vector<16x16xf32>
    %3 = math.tanh %2 : vector<16x16xf32>
    %c0_3 = arith.constant 0 : index
    %c0_4 = arith.constant 0 : index
    %4 = vector.load %arg3[%c0_3, %c0_4] : memref<1x16xf32, #tpu.memory_space<vmem>>, vector<1x16xf32>
    %5 = vector.broadcast %4 : vector<1x16xf32> to vector<16x16xf32>
    %6 = arith.mulf %3, %5 : vector<16x16xf32>
    %cst_5 = arith.constant dense<0.000000e+00> : vector<16xf32>
    %7 = vector.multi_reduction <add>, %6, %cst_5 [1] : vector<16x16xf32> to vector<16xf32>
    %8 = vector.shape_cast %7 : vector<16xf32> to vector<16x1xf32>
    %c0_6 = arith.constant 0 : index
    %c0_7 = arith.constant 0 : index
    %9 = vector.load %arg4[%c0_6, %c0_7] : memref<16x1xf32, #tpu.memory_space<vmem>>, vector<16x1xf32>
    tpu.vector_store %arg4[%c0_6, %c0_7], %8 {strides = array<i32>} : memref<16x1xf32, #tpu.memory_space<vmem>>, vector<16x1xf32>,
    return
  }
  func.func @transform_0(%arg0: i32) -> (i32, i32) {
    %c0_i32 = arith.constant 0 : i32
    %c0_i32_0 = arith.constant 0 : i32
    return %arg0, %c0_i32 : i32, i32
  }
  func.func @transform_1(%arg0: i32) -> (i32, i32) {
    %c0_i32 = arith.constant 0 : i32
    %c0_i32_0 = arith.constant 0 : i32
    %c0_i32_1 = arith.constant 0 : i32
    return %c0_i32, %c0_i32_0 : i32, i32
  }
  func.func @transform_2(%arg0: i32) -> (i32, i32) {
    %c0_i32 = arith.constant 0 : i32
    %c0_i32_0 = arith.constant 0 : i32
    %c0_i32_1 = arith.constant 0 : i32
    return %c0_i32, %c0_i32_0 : i32, i32
  }
  func.func @transform_3(%arg0: i32) -> (i32, i32) {
    %c0_i32 = arith.constant 0 : i32
    %c0_i32_0 = arith.constant 0 : i32
    return %arg0, %c0_i32 : i32, i32
  }
}

</mosaic_0001>

<llo_original>
// kernel: tpu_custom_call.1
$region0: #{tpu_custom_call.1}
  #allocation0 [shape = 'u32[]', space=smem, size = 0x4, offset = 0x4, fixed_abs, tag = 'smem constant byte address 0x4 - core index']
  #allocation1 [shape = 'u32[72,128]{1,0:T(1,128)}', space=vmem, size = 0x9000, scoped, tag = 'internal scratch']
  %s0 = inlined_call_operand.vmem [shape: f32[16,32], index: 0, kind: input, shape index: {}]
  %s1 = inlined_call_operand.vmem [shape: f32[32,16], index: 1, kind: input, shape index: {}]
  %s2 = inlined_call_operand.vmem [shape: f32[1,16], index: 2, kind: input, shape index: {}]
  %s3 = inlined_call_operand.vmem [shape: f32[16,1], index: 3, kind: output, shape index: {}]
  %s4 = sld [smem:[#allocation0]]
  $region22: #{tpu_custom_call.1} parent=0
    _
  %s6 = ssub.s32 1, %s4
  %s7 = scalar_select 0, %s6, %s4
  // Predicated region
  $region2: #{tpu_custom_call.1} parent=0 // pred_check
    _
  $region3: #{tpu_custom_call.1} parent=0 // pred_check_branch
    %9 = sbr.rel (0) target = $region5
  $region4: #{tpu_custom_call.1} parent=0 // pred_region
    _
  $region5: #{tpu_custom_call.1} parent=0 // pred_fallthru
    _
  // Predicated region
  $region6: #{tpu_custom_call.1} parent=0 // pred_check
    _
  $region7: #{tpu_custom_call.1} parent=0 // pred_check_branch
    %11 = sbr.rel (0) target = $region9
  $region8: #{tpu_custom_call.1} parent=0 // pred_region
    _
  $region9: #{tpu_custom_call.1} parent=0 // pred_fallthru
    _
  // Predicated region
  $region10: #{tpu_custom_call.1} parent=0 // pred_check
    _
  $region11: #{tpu_custom_call.1} parent=0 // pred_check_branch
    %13 = sbr.rel (0) target = $region13
  $region12: #{tpu_custom_call.1} parent=0 // pred_region
    _
  $region13: #{tpu_custom_call.1} parent=0 // pred_fallthru
    _
  %v14 = vld [vmem:[%s0] sm:$0xff]
  %v15 = vld [vmem:[%s0 + $0x8] sm:$0xff]
  %v16 = vld [vmem:[%s1] sm:$0xff]
  %v17 = vld [vmem:[%s1 + $0x8] sm:$0xff]
  %v18 = vld [vmem:[%s1 + $0x10] sm:$0xff]
  %v19 = vld [vmem:[%s1 + $0x18] sm:$0xff]
  %vm20 = vcmask 261120
  %v22 = vsel %vm20, %v14, 0
  %v25 = vsel %vm20, %v15, 0
  %27 = vmatpush.msra.mxu0 0.0
  %28 = vmatpush.msra.mxu0 0.0
  %29 = vmatpush.msra.mxu0 0.0
  %30 = vmatpush.msra.mxu0 0.0
  %31 = vmatpush.msra.mxu0 0.0
  %32 = vmatpush.msra.mxu0 0.0
  %33 = vmatpush.msra.mxu0 0.0
  %34 = vmatpush.msra.mxu0 0.0
  %35 = vmatpush.msra.mxu0 0.0
  %36 = vmatpush.msra.mxu0 0.0
  %37 = vmatpush.msra.mxu0 0.0
  %38 = vmatpush.msra.mxu0 0.0
  %39 = vmatpush.msra.mxu0 %v19
  %40 = vmatpush.msra.mxu0 %v18
  %41 = vmatpush.msra.mxu0 %v17
  %42 = vmatpush.msra.mxu0 %v16
  %43 = vmatmul.f32.gmra.mxu0 %v22
  %v44 = vpop.f32.mrf.mxu0
  %v45 = vadd.f32 0.0, %v44
  %46 = vmatmul.f32.gmra.mxu0 %v25
  %v47 = vpop.f32.mrf.mxu0
  %v48 = vadd.f32 0.0, %v47
  %49 = vdwg.mxu0
  %v50 = vtanh.pop %v45
  %v51 = vtanh.pop %v48
  %v52 = vld [vmem:[%s2] sm:$0x1]
  %v54 = vperm.slane %v52, 0
  %v56 = vmul.f32 %v50, %v54
  %v57 = vmul.f32 %v51, %v54
  %vm58 = vcmask 130048
  %v59 = vsel %vm58, %v56, 0.0
  %60 = vadd.xlane.f32.xlu0 %v59
  %v61 = vpop.xlane.xlu0 %60
  %v62 = vsel %vm58, %v57, 0.0
  %63 = vadd.xlane.f32.xlu0 %v62
  %v64 = vpop.xlane.xlu0 %63
  %vm65 = vcmask 7168
  %66 = vst.msk [vmem:[%s3] sm:$0xff] %vm65, %v61
  %67 = vst.msk [vmem:[%s3 + $0x8] sm:$0xff] %vm65, %v64
  // Predicated region
  $region14: #{tpu_custom_call.1} parent=0 // pred_check
    _
  $region15: #{tpu_custom_call.1} parent=0 // pred_check_branch
    %69 = sbr.rel (0) target = $region17
  $region16: #{tpu_custom_call.1} parent=0 // pred_region
    _
  $region17: #{tpu_custom_call.1} parent=0 // pred_fallthru
    _
  // Predicated region
  $region18: #{tpu_custom_call.1} parent=0 // pred_check
    _
  $region19: #{tpu_custom_call.1} parent=0 // pred_check_branch
    %71 = sbr.rel (0) target = $region21
  $region20: #{tpu_custom_call.1} parent=0 // pred_region
    _
  $region21: #{tpu_custom_call.1} parent=0 // pred_fallthru
    _

</llo_original>
